<compile_context>
chip_gen: v7x
topology: tpu7x:2x2x1
jax: 0.10.0
libtpu: 0.0.40
codegen_flags: <defaults>
</compile_context>

<pallas_src>
from functools import partial

import jax
import jax.numpy as jnp
from jax import lax
from jax.experimental import pallas as pl
from jax.experimental.pallas import tpu as pltpu


def _sad_fwd_kernel(seed_ref,                                    # SMEM scalar prefetch
                    x_ref, fcw_ref, fcb_ref, clw_ref, clb_ref,   # VMEM inputs
                    out_x_ref, out_s_ref,                        # VMEM outputs
                    *, row_tile, n_feature, p_drop, training):
    # ---- fc: x @ W^T, W kept in torch (out, in) layout -> contract dim1 vs dim1
    h = lax.dot_general(
        x_ref[...], fcw_ref[...],
        dimension_numbers=(((1,), (1,)), ((), ())),
        preferred_element_type=jnp.float32)                      # (row_tile, F) f32
    h = jnp.maximum(h + fcb_ref[...], 0.0)                       # bias + ReLU

    # ---- dropout(p): counter-hash RNG, one threshold compare + one where ------
    if training and p_drop > 0.0:
        row0 = pl.program_id(0) * row_tile                       # global row offset
        r = lax.broadcasted_iota(jnp.int32, (row_tile, n_feature), 0)
        c = lax.broadcasted_iota(jnp.int32, (row_tile, n_feature), 1)
        idx = (r + row0) * n_feature + c                         # unique per element
        hb = lax.convert_element_type(idx, jnp.uint32)
        hb = hb ^ lax.convert_element_type(seed_ref[0], jnp.uint32)
        hb = hb * jnp.uint32(0x85EBCA6B)                         # splitmix-style mix
        hb = hb ^ lax.shift_right_logical(hb, jnp.uint32(13))
        hb = hb * jnp.uint32(0xC2B2AE35)
        hb = hb ^ lax.shift_right_logical(hb, jnp.uint32(16))
        u24 = hb & jnp.uint32(0x00FFFFFF)                        # 24-bit uniform
        thresh = jnp.uint32(int(p_drop * float(1 << 24)))
        keep = u24 >= thresh                                     # P(keep) = 1 - p
        x = jnp.where(keep, h * jnp.float32(1.0 / (1.0 - p_drop)), 0.0)
    else:
        x = h

    out_x_ref[...] = x.astype(out_x_ref.dtype)

    # ---- classifier + sigmoid, lane-dense output ------------------------------
    # (1, F) . (row_tile, F)^T -> (1, row_tile): MXU result is already lane-dense.
    logit = lax.dot_general(
        clw_ref[...], x,
        dimension_numbers=(((1,), (1,)), ((), ())),
        preferred_element_type=jnp.float32)                      # (1, row_tile)
    logit = logit + clb_ref[...]                                 # (1,1) broadcasts
    out_s_ref[...] = jax.nn.sigmoid(logit).reshape(1, 1, row_tile)


def _pick_row_tile(n_rows, target=256):
    """Largest multiple-of-8 divisor of n_rows that is <= target."""
    if n_rows % 8 != 0:
        return n_rows
    best, t = 8, 8
    while t <= min(n_rows, target):
        if n_rows % t == 0:
            best = t
        t += 8
    return best


def model_sad_forward(inputs, fc_w, fc_b, cl_w, cl_b, seed=0, *,
                      is_training=True, p_drop=0.7, row_tile=None,
                      use_bf16_matmul=False):
    """inputs: (B, T, F) f32; fc_w: (F, F) torch layout (out, in); fc_b: (F,);
    cl_w: (1, F); cl_b: (1,).  Returns (x (B,T,F), scores (B,T,1))."""
    B, T, F = inputs.shape
    rows = B * T
    if row_tile is None:
        row_tile = _pick_row_tile(rows)
    assert rows % row_tile == 0, "row_tile must evenly divide B*T"
    grid = (rows // row_tile,)

    # bf16 operands feed the v6e/v7x MXU at full rate and halve the weight DMA;
    # accumulation stays f32 inside the kernel.  Default f32 == nn.Linear exactly.
    mm_dtype = jnp.bfloat16 if use_bf16_matmul else jnp.float32
    x2 = inputs.reshape(rows, F).astype(mm_dtype)
    fcw = fc_w.astype(mm_dtype)                      # torch (out,in) layout, NO transpose
    fcb = fc_b.reshape(1, F).astype(jnp.float32)
    clw = cl_w.reshape(1, F).astype(jnp.float32)
    clb = cl_b.reshape(1, 1).astype(jnp.float32)
    seed_arr = jnp.asarray([seed], dtype=jnp.int32)

    kern = partial(_sad_fwd_kernel, row_tile=row_tile, n_feature=F,
                   p_drop=p_drop, training=is_training)

    grid_spec = pltpu.PrefetchScalarGridSpec(
        num_scalar_prefetch=1,                                   # dropout seed (SMEM)
        grid=grid,
        in_specs=[
            pl.BlockSpec((row_tile, F), lambda i, *_: (i, 0)),   # x rows (pipelined)
            pl.BlockSpec((F, F),        lambda i, *_: (0, 0)),   # fc weight (resident)
            pl.BlockSpec((1, F),        lambda i, *_: (0, 0)),   # fc bias
            pl.BlockSpec((1, F),        lambda i, *_: (0, 0)),   # classifier weight
            pl.BlockSpec((1, 1),        lambda i, *_: (0, 0)),   # classifier bias
        ],
        out_specs=[
            pl.BlockSpec((row_tile, F),    lambda i, *_: (i, 0)),     # relu/dropout x
            pl.BlockSpec((1, 1, row_tile), lambda i, *_: (i, 0, 0)),  # scores, lane-dense
        ],
    )
    out_shapes = (
        jax.ShapeDtypeStruct((rows, F), jnp.float32),
        jax.ShapeDtypeStruct((grid[0], 1, row_tile), jnp.float32),
    )

    # NOTE: at large F / row_tile, set vmem_limit_bytes explicitly (v7x has only
    # 64 MiB VMEM) and size row_tile so resident fc_w + double-buffered tiles fit.
    x_out, scores = pl.pallas_call(
        kern,
        grid_spec=grid_spec,
        out_shape=out_shapes,
        compiler_params=pltpu.CompilerParams(
            dimension_semantics=("parallel",)),                  # megacore-shardable
    )(seed_arr, x2, fcw, fcb, clw, clb)

    x3 = x_out.reshape(B, T, F)
    s3 = scores.reshape(B, T, 1)
    return x3, s3


def xavier_uniform(key, shape):
    fan_out, fan_in = shape
    bound = (6.0 / (fan_in + fan_out)) ** 0.5
    return jax.random.uniform(key, shape, jnp.float32, -bound, bound)


if __name__ == "__main__":
    B, T, F = 2, 64, 32      # batch clips, segments per clip, n_feature

    key = jax.random.PRNGKey(0)
    k_in, k_fc, k_cl = jax.random.split(key, 3)

    inputs = jax.random.normal(k_in, (B, T, F), jnp.float32)

    # weights_init: xavier_uniform on weights, zero biases
    fc_w = xavier_uniform(k_fc, (F, F))      # torch layout (out_features, in_features)
    fc_b = jnp.zeros((F,), jnp.float32)
    cl_w = xavier_uniform(k_cl, (1, F))
    cl_b = jnp.zeros((1,), jnp.float32)

    # training path (dropout active); row_tile=64 -> 2-step parallel row grid
    x, scores = model_sad_forward(inputs, fc_w, fc_b, cl_w, cl_b, seed=1234,
                                  is_training=True, row_tile=64)
    jax.block_until_ready((x, scores))
    assert x.shape == (B, T, F)
    assert scores.shape == (B, T, 1)
    assert bool(jnp.all(jnp.isfinite(x)))
    assert bool(jnp.all(jnp.isfinite(scores)))
    assert bool(jnp.all((scores >= 0.0) & (scores <= 1.0)))

    # eval path (no dropout): verify against a pure-JAX reference
    x_eval, s_eval = model_sad_forward(inputs, fc_w, fc_b, cl_w, cl_b,
                                       is_training=False, row_tile=64)
    jax.block_until_ready((x_eval, s_eval))
    assert x_eval.shape == (B, T, F) and s_eval.shape == (B, T, 1)

    x_ref = jnp.maximum(inputs @ fc_w.T + fc_b, 0.0)
    s_ref = jax.nn.sigmoid(x_ref @ cl_w.T + cl_b)
    assert bool(jnp.allclose(x_eval, x_ref, atol=1e-5, rtol=1e-5))
    assert bool(jnp.allclose(s_eval, s_ref, atol=1e-5, rtol=1e-5))

    print("KERNEL_OK")
</pallas_src>

<mosaic_0001>
module attributes {stable_mosaic.version = 11 : i64} {
  func.func @_sad_fwd_kernel(%arg0: i32, %arg1: memref<1xi32, #tpu.memory_space<smem>>, %arg2: memref<64x32xf32, #tpu.memory_space<vmem>>, %arg3: memref<32x32xf32, #tpu.memory_space<vmem>>, %arg4: memref<1x32xf32, #tpu.memory_space<vmem>>, %arg5: memref<1x32xf32, #tpu.memory_space<vmem>>, %arg6: memref<1x1xf32, #tpu.memory_space<vmem>>, %arg7: memref<64x32xf32, #tpu.memory_space<vmem>>, %arg8: memref<1x1x64xf32, #tpu.memory_space<vmem>>) attributes {dimension_semantics = [#tpu.dimension_semantics<parallel>], iteration_bounds = array<i64: 2>, scalar_prefetch = 1 : i64, scratch_operands = 0 : i64, tpu.core_type = #tpu.core_type<tc>, window_params = [{transform_indices = @transform_0, window_bounds = array<i64: 64, 32>}, {pipeline_mode = #tpu.pipeline_mode<synchronous>, transform_indices = @transform_1, window_bounds = array<i64: 32, 32>}, {pipeline_mode = #tpu.pipeline_mode<synchronous>, transform_indices = @transform_2, window_bounds = array<i64: 1, 32>}, {pipeline_mode = #tpu.pipeline_mode<synchronous>, transform_indices = @transform_3, window_bounds = array<i64: 1, 32>}, {pipeline_mode = #tpu.pipeline_mode<synchronous>, transform_indices = @transform_4, window_bounds = array<i64: 1, 1>}, {transform_indices = @transform_5, window_bounds = array<i64: 64, 32>}, {transform_indices = @transform_6, window_bounds = array<i64: 1, 1, 64>}]} {
    %c0 = arith.constant 0 : index
    %c0_0 = arith.constant 0 : index
    %0 = vector.load %arg2[%c0, %c0_0] : memref<64x32xf32, #tpu.memory_space<vmem>>, vector<64x32xf32>
    %c0_1 = arith.constant 0 : index
    %c0_2 = arith.constant 0 : index
    %1 = vector.load %arg3[%c0_1, %c0_2] : memref<32x32xf32, #tpu.memory_space<vmem>>, vector<32x32xf32>
    %cst = arith.constant dense<0.000000e+00> : vector<64x32xf32>
    %2 = tpu.matmul %0, %1, %cst {dimension_numbers = #tpu.dot_dimension_numbers<[1], [1], [0], [0], [0, 0, 1, 0], [], []>} : vector<64x32xf32>, vector<32x32xf32>, vector<64x32xf32> -> vector<64x32xf32>
    %c0_3 = arith.constant 0 : index
    %c0_4 = arith.constant 0 : index
    %3 = vector.load %arg4[%c0_3, %c0_4] : memref<1x32xf32, #tpu.memory_space<vmem>>, vector<1x32xf32>
    %4 = vector.broadcast %3 : vector<1x32xf32> to vector<64x32xf32>
    %5 = arith.addf %2, %4 : vector<64x32xf32>
    %cst_5 = arith.constant 0.000000e+00 : f32
    %6 = vector.broadcast %cst_5 : f32 to vector<64x32xf32>
    %7 = arith.maximumf %5, %6 : vector<64x32xf32>
    %c64_i32 = arith.constant 64 : i32
    %8 = arith.muli %arg0, %c64_i32 : i32
    %9 = tpu.iota {dimensions = array<i32: 0>} : vector<64x32xi32>
    %10 = tpu.iota {dimensions = array<i32: 1>} : vector<64x32xi32>
    %11 = vector.broadcast %8 : i32 to vector<64x32xi32>
    %12 = arith.addi %9, %11 : vector<64x32xi32>
    %c32_i32 = arith.constant 32 : i32
    %13 = vector.broadcast %c32_i32 : i32 to vector<64x32xi32>
    %14 = arith.muli %12, %13 : vector<64x32xi32>
    %15 = arith.addi %14, %10 : vector<64x32xi32>
    %c0_6 = arith.constant 0 : index
    %16 = memref.load %arg1[%c0_6] : memref<1xi32, #tpu.memory_space<smem>>
    %17 = vector.broadcast %16 : i32 to vector<64x32xi32>
    %18 = arith.xori %15, %17 : vector<64x32xi32>
    %c-2048144789_i32 = arith.constant -2048144789 : i32
    %19 = vector.broadcast %c-2048144789_i32 : i32 to vector<64x32xi32>
    %20 = arith.muli %18, %19 : vector<64x32xi32>
    %c13_i32 = arith.constant 13 : i32
    %21 = vector.broadcast %c13_i32 : i32 to vector<64x32xi32>
    %22 = arith.shrui %20, %21 : vector<64x32xi32>
    %23 = arith.xori %20, %22 : vector<64x32xi32>
    %c-1028477387_i32 = arith.constant -1028477387 : i32
    %24 = vector.broadcast %c-1028477387_i32 : i32 to vector<64x32xi32>
    %25 = arith.muli %23, %24 : vector<64x32xi32>
    %c16_i32 = arith.constant 16 : i32
    %26 = vector.broadcast %c16_i32 : i32 to vector<64x32xi32>
    %27 = arith.shrui %25, %26 : vector<64x32xi32>
    %28 = arith.xori %25, %27 : vector<64x32xi32>
    %c16777215_i32 = arith.constant 16777215 : i32
    %29 = vector.broadcast %c16777215_i32 : i32 to vector<64x32xi32>
    %30 = arith.andi %28, %29 : vector<64x32xi32>
    %c11744051_i32 = arith.constant 11744051 : i32
    %31 = vector.broadcast %c11744051_i32 : i32 to vector<64x32xi32>
    %32 = arith.cmpi uge, %30, %31 : vector<64x32xi32>
    %cst_7 = arith.constant 3.33333325 : f32
    %33 = vector.broadcast %cst_7 : f32 to vector<64x32xf32>
    %34 = arith.mulf %7, %33 : vector<64x32xf32>
    %cst_8 = arith.constant 0.000000e+00 : f32
    %35 = vector.broadcast %cst_8 : f32 to vector<64x32xf32>
    %36 = arith.select %32, %34, %35 : vector<64x32xi1>, vector<64x32xf32>
    %c0_9 = arith.constant 0 : index
    %c0_10 = arith.constant 0 : index
    %37 = vector.load %arg7[%c0_9, %c0_10] : memref<64x32xf32, #tpu.memory_space<vmem>>, vector<64x32xf32>
    tpu.vector_store %arg7[%c0_9, %c0_10], %36 {strides = array<i32>} : memref<64x32xf32, #tpu.memory_space<vmem>>, vector<64x32xf32>,
    %c0_11 = arith.constant 0 : index
    %c0_12 = arith.constant 0 : index
    %38 = vector.load %arg5[%c0_11, %c0_12] : memref<1x32xf32, #tpu.memory_space<vmem>>, vector<1x32xf32>
    %cst_13 = arith.constant dense<0.000000e+00> : vector<1x64xf32>
    %39 = tpu.matmul %38, %36, %cst_13 {dimension_numbers = #tpu.dot_dimension_numbers<[1], [1], [0], [0], [0, 0, 1, 0], [], []>} : vector<1x32xf32>, vector<64x32xf32>, vector<1x64xf32> -> vector<1x64xf32>
    %c0_14 = arith.constant 0 : index
    %c0_15 = arith.constant 0 : index
    %40 = vector.load %arg6[%c0_14, %c0_15] : memref<1x1xf32, #tpu.memory_space<vmem>>, vector<1x1xf32>
    %41 = vector.broadcast %40 : vector<1x1xf32> to vector<1x64xf32>
    %42 = arith.addf %39, %41 : vector<1x64xf32>
    %43 = arith.negf %42 : vector<1x64xf32>
    %44 = math.exp %43 : vector<1x64xf32>
    %cst_16 = arith.constant 1.000000e+00 : f32
    %45 = vector.broadcast %cst_16 : f32 to vector<1x64xf32>
    %46 = arith.addf %45, %44 : vector<1x64xf32>
    %47 = arith.divf %45, %46 : vector<1x64xf32>
    %48 = vector.shape_cast %47 : vector<1x64xf32> to vector<1x1x64xf32>
    %c0_17 = arith.constant 0 : index
    %c0_18 = arith.constant 0 : index
    %c0_19 = arith.constant 0 : index
    %49 = vector.load %arg8[%c0_17, %c0_18, %c0_19] : memref<1x1x64xf32, #tpu.memory_space<vmem>>, vector<1x1x64xf32>
    tpu.vector_store %arg8[%c0_17, %c0_18, %c0_19], %48 {strides = array<i32>} : memref<1x1x64xf32, #tpu.memory_space<vmem>>, vector<1x1x64xf32>,
    return
  }
  func.func @transform_0(%arg0: i32, %arg1: memref<1xi32, #tpu.memory_space<smem>>) -> (i32, i32) {
    %c0_i32 = arith.constant 0 : i32
    %c0_i32_0 = arith.constant 0 : i32
    return %arg0, %c0_i32 : i32, i32
  }
  func.func @transform_1(%arg0: i32, %arg1: memref<1xi32, #tpu.memory_space<smem>>) -> (i32, i32) {
    %c0_i32 = arith.constant 0 : i32
    %c0_i32_0 = arith.constant 0 : i32
    %c0_i32_1 = arith.constant 0 : i32
    return %c0_i32, %c0_i32_0 : i32, i32
  }
  func.func @transform_2(%arg0: i32, %arg1: memref<1xi32, #tpu.memory_space<smem>>) -> (i32, i32) {
    %c0_i32 = arith.constant 0 : i32
    %c0_i32_0 = arith.constant 0 : i32
    %c0_i32_1 = arith.constant 0 : i32
    return %c0_i32, %c0_i32_0 : i32, i32
  }
  func.func @transform_3(%arg0: i32, %arg1: memref<1xi32, #tpu.memory_space<smem>>) -> (i32, i32) {
    %c0_i32 = arith.constant 0 : i32
    %c0_i32_0 = arith.constant 0 : i32
    %c0_i32_1 = arith.constant 0 : i32
    return %c0_i32, %c0_i32_0 : i32, i32
  }
  func.func @transform_4(%arg0: i32, %arg1: memref<1xi32, #tpu.memory_space<smem>>) -> (i32, i32) {
    %c0_i32 = arith.constant 0 : i32
    %c0_i32_0 = arith.constant 0 : i32
    %c0_i32_1 = arith.constant 0 : i32
    return %c0_i32, %c0_i32_0 : i32, i32
  }
  func.func @transform_5(%arg0: i32, %arg1: memref<1xi32, #tpu.memory_space<smem>>) -> (i32, i32) {
    %c0_i32 = arith.constant 0 : i32
    %c0_i32_0 = arith.constant 0 : i32
    return %arg0, %c0_i32 : i32, i32
  }
  func.func @transform_6(%arg0: i32, %arg1: memref<1xi32, #tpu.memory_space<smem>>) -> (i32, i32, i32) {
    %c0_i32 = arith.constant 0 : i32
    %c0_i32_0 = arith.constant 0 : i32
    %c0_i32_1 = arith.constant 0 : i32
    return %arg0, %c0_i32, %c0_i32_0 : i32, i32, i32
  }
}

</mosaic_0001>

<llo_original>
// kernel: tpu_custom_call.1
$region0: #{tpu_custom_call.1}
  #allocation0 [shape = 'u32[]', space=smem, size = 0x4, offset = 0x4, fixed_abs, tag = 'smem constant byte address 0x4 - core index']
  #allocation1 [shape = 'u32[144,128]{1,0:T(1,128)}', space=vmem, size = 0x12000, scoped, tag = 'internal scratch']
  #allocation2 [shape = 's32[1]{0}', space=sflag, size = 0x4, scoped, tag = 'scoped memory for tpu_custom_call.1']
  #allocation3 [shape = 's32[1]{0:T(128)S(6)}', space=smem, size = 0x200, scoped, tag = 'prefetched SMEM operand 0']
  #allocation4 [shape = 'f32[1,1]{1,0:T(1,128)S(1)}', space=vmem, size = 0x200, scoped, tag = 'scoped memory for tpu_custom_call.1']
  %s0 = inlined_call_operand.<no memory space> [shape: s32[1], index: 0, kind: input, shape index: {}]
  %s1 = inlined_call_operand.vmem [shape: f32[128,32], index: 1, kind: input, shape index: {}]
  %s2 = inlined_call_operand.vmem [shape: f32[32,32], index: 2, kind: input, shape index: {}]
  %s3 = inlined_call_operand.vmem [shape: f32[1,32], index: 3, kind: input, shape index: {}]
  %s4 = inlined_call_operand.vmem [shape: f32[1,32], index: 4, kind: input, shape index: {}]
  %s5 = inlined_call_operand.<no memory space> [shape: f32[1,1], index: 5, kind: input, shape index: {}]
  %s6 = inlined_call_operand.vmem [shape: f32[128,32], index: 6, kind: output, shape index: {0}]
  %s7 = inlined_call_operand.hbm [shape: f32[2,1,64], index: 7, kind: output, shape index: {1}]
  %8 = xla_tuple %s6, %s7
  %s9 = sld [smem:[#allocation0]]
  $region61: #{tpu_custom_call.1} parent=0
    _
  %s11 = ssub.s32 1, %s9
  %s12 = scalar_select 0, %s11, %s9
  %13 = sst [smem:[#allocation3]] %s0
  %v14 = vstv %s5
  %15 = vst [vmem:[#allocation4] sm:$0x1] %v14
  $region1: #{tpu_custom_call.1} parent=0
    #allocation5 [shape = 'u8[1024]{0}', space=vmem, size = 0x400, scoped, tag = 'output window, operand 1']
    #allocation6 [shape = 's32[2]{0}', space=sflag, size = 0x8, scoped, tag = 'scoped memory for tpu_custom_call.1']
    %16 = vsyncpa [#allocation6], 0
    %s17 = scalar_lea.sflag [#allocation6], 1
    %18 = vsyncpa %s17, 0
    loop: start=0, step=1, limit=4
    $region2: #{tpu_custom_call.1} parent=1 // loop_pre_header
      _
    $region3: #{tpu_custom_call.1} parent=1 // loop_header
      %s20 = sphi 0, %s24
      %p21 = scmp.ge.s32.totalorder %s20, 4
      %s30 = sphi 0, %s32
      %s33 = sphi 0, %s30
      %s34 = sphi 0, %s33
      %s50 = sphi 0, %s34
      %s54 = sphi 0, %s54
      %s56 = sphi 0, %s54
      %s57 = sphi 0, %s56
      %s71 = sphi 0, %s57
      %s75 = sphi 0, %s75
      %s77 = sphi 0, %s75
      %s78 = sphi 0, %s77
      %s92 = sphi 0, %s78
      %s96 = sphi 0, %s96
      %s98 = sphi 0, %s96
      %s99 = sphi 0, %s98
      %s113 = sphi 0, %s99
      %s117 = sphi 0, %s117
      %s119 = sphi 0, %s117
      %s120 = sphi 0, %s119
      %s134 = sphi 0, %s120
      %s140 = sphi 0, %s142
      %s143 = sphi 0, %s140
      %s144 = sphi 0, %s143
      %s160 = sphi 0, %s144
      %s166 = sphi 0, %s168
      %s169 = sphi 0, %s166
      %s170 = sphi 0, %s169
      %s186 = sphi 0, %s170
    $region4: #{tpu_custom_call.1} parent=1 // loop_header_branch
      %23 = sbr.rel (%p21) target = $region8
    $region5: #{tpu_custom_call.1} parent=1 // loop_body
      %s25 = ssub.s32 %s20, 1
      %s26 = ssub.s32 %s20, 2
      %s27 = sadd.s32 %s20, 1
      %s28 = ssub.s32 %s20, %s27
      %p29 = scmp.eq.s32.totalorder %s28, 0
      %s31 = sadd.s32 %s30, 1
      %s32 = scalar_select %p29, %s30, %s31
      %p35 = pneg %p29
      %p36 = scmp.eq.s32.totalorder %s20, 1
      %p37 = por %p35, %p36
      %p38 = scmp.ne.s32.totalorder %s30, %s33
      %p39 = scmp.eq.s32.totalorder %s20, 0
      %p40 = por %p38, %p39
      %p41 = scmp.ne.s32.totalorder %s30, %s33
      %p42 = scmp.eq.s32.totalorder %s25, 1
      %p43 = por %p41, %p42
      %p44 = scmp.ne.s32.totalorder %s33, %s34
      %p45 = scmp.eq.s32.totalorder %s25, 0
      %p46 = por %p44, %p45
      %p47 = scmp.ne.s32.totalorder %s33, %s34
      %p48 = scmp.eq.s32.totalorder %s26, 1
      %p49 = por %p47, %p48
      %p51 = scmp.ne.s32.totalorder %s34, %s50
      %p52 = scmp.eq.s32.totalorder %s26, 0
      %p53 = por %p51, %p52
      %s55 = sadd.s32 %s54, 1
      %p58 = scmp.eq.s32.totalorder %s20, 1
      %p59 = scmp.ne.s32.totalorder %s54, %s56
      %p60 = scmp.eq.s32.totalorder %s20, 0
      %p61 = por %p59, %p60
      %p62 = scmp.ne.s32.totalorder %s54, %s56
      %p63 = scmp.eq.s32.totalorder %s25, 1
      %p64 = por %p62, %p63
      %p65 = scmp.ne.s32.totalorder %s56, %s57
      %p66 = scmp.eq.s32.totalorder %s25, 0
      %p67 = por %p65, %p66
      %p68 = scmp.ne.s32.totalorder %s56, %s57
      %p69 = scmp.eq.s32.totalorder %s26, 1
      %p70 = por %p68, %p69
      %p72 = scmp.ne.s32.totalorder %s57, %s71
      %p73 = scmp.eq.s32.totalorder %s26, 0
      %p74 = por %p72, %p73
      %s76 = sadd.s32 %s75, 1
      %p79 = scmp.eq.s32.totalorder %s20, 1
      %p80 = scmp.ne.s32.totalorder %s75, %s77
      %p81 = scmp.eq.s32.totalorder %s20, 0
      %p82 = por %p80, %p81
      %p83 = scmp.ne.s32.totalorder %s75, %s77
      %p84 = scmp.eq.s32.totalorder %s25, 1
      %p85 = por %p83, %p84
      %p86 = scmp.ne.s32.totalorder %s77, %s78
      %p87 = scmp.eq.s32.totalorder %s25, 0
      %p88 = por %p86, %p87
      %p89 = scmp.ne.s32.totalorder %s77, %s78
      %p90 = scmp.eq.s32.totalorder %s26, 1
      %p91 = por %p89, %p90
      %p93 = scmp.ne.s32.totalorder %s78, %s92
      %p94 = scmp.eq.s32.totalorder %s26, 0
      %p95 = por %p93, %p94
      %s97 = sadd.s32 %s96, 1
      %p100 = scmp.eq.s32.totalorder %s20, 1
      %p101 = scmp.ne.s32.totalorder %s96, %s98
      %p102 = scmp.eq.s32.totalorder %s20, 0
      %p103 = por %p101, %p102
      %p104 = scmp.ne.s32.totalorder %s96, %s98
      %p105 = scmp.eq.s32.totalorder %s25, 1
      %p106 = por %p104, %p105
      %p107 = scmp.ne.s32.totalorder %s98, %s99
      %p108 = scmp.eq.s32.totalorder %s25, 0
      %p109 = por %p107, %p108
      %p110 = scmp.ne.s32.totalorder %s98, %s99
      %p111 = scmp.eq.s32.totalorder %s26, 1
      %p112 = por %p110, %p111
      %p114 = scmp.ne.s32.totalorder %s99, %s113
      %p115 = scmp.eq.s32.totalorder %s26, 0
      %p116 = por %p114, %p115
      %s118 = sadd.s32 %s117, 1
      %p121 = scmp.eq.s32.totalorder %s20, 1
      %p122 = scmp.ne.s32.totalorder %s117, %s119
      %p123 = scmp.eq.s32.totalorder %s20, 0
      %p124 = por %p122, %p123
      %p125 = scmp.ne.s32.totalorder %s117, %s119
      %p126 = scmp.eq.s32.totalorder %s25, 1
      %p127 = por %p125, %p126
      %p128 = scmp.ne.s32.totalorder %s119, %s120
      %p129 = scmp.eq.s32.totalorder %s25, 0
      %p130 = por %p128, %p129
      %p131 = scmp.ne.s32.totalorder %s119, %s120
      %p132 = scmp.eq.s32.totalorder %s26, 1
      %p133 = por %p131, %p132
      %p135 = scmp.ne.s32.totalorder %s120, %s134
      %p136 = scmp.eq.s32.totalorder %s26, 0
      %p137 = por %p135, %p136
      %s138 = ssub.s32 %s20, %s27
      %p139 = scmp.eq.s32.totalorder %s138, 0
      %s141 = sadd.s32 %s140, 1
      %s142 = scalar_select %p139, %s140, %s141
      %p145 = pneg %p139
      %p146 = scmp.eq.s32.totalorder %s20, 1
      %p147 = por %p145, %p146
      %p148 = scmp.ne.s32.totalorder %s140, %s143
      %p149 = scmp.eq.s32.totalorder %s20, 0
      %p150 = por %p148, %p149
      %p151 = scmp.ne.s32.totalorder %s140, %s143
      %p152 = scmp.eq.s32.totalorder %s25, 1
      %p153 = por %p151, %p152
      %p154 = scmp.ne.s32.totalorder %s143, %s144
      %p155 = scmp.eq.s32.totalorder %s25, 0
      %p156 = por %p154, %p155
      %p157 = scmp.ne.s32.totalorder %s143, %s144
      %p158 = scmp.eq.s32.totalorder %s26, 1
      %p159 = por %p157, %p158
      %p161 = scmp.ne.s32.totalorder %s144, %s160
      %p162 = scmp.eq.s32.totalorder %s26, 0
      %p163 = por %p161, %p162
      %s164 = ssub.s32 %s20, %s27
      %p165 = scmp.eq.s32.totalorder %s164, 0
      %s167 = sadd.s32 %s166, 1
      %s168 = scalar_select %p165, %s166, %s167
      %p171 = pneg %p165
      %p172 = scmp.eq.s32.totalorder %s20, 1
      %p173 = por %p171, %p172
      %p174 = scmp.ne.s32.totalorder %s166, %s169
      %p175 = scmp.eq.s32.totalorder %s20, 0
      %p176 = por %p174, %p175
      %p177 = scmp.ne.s32.totalorder %s166, %s169
      %p178 = scmp.eq.s32.totalorder %s25, 1
      %p179 = por %p177, %p178
      %p180 = scmp.ne.s32.totalorder %s169, %s170
      %p181 = scmp.eq.s32.totalorder %s25, 0
      %p182 = por %p180, %p181
      %p183 = scmp.ne.s32.totalorder %s169, %s170
      %p184 = scmp.eq.s32.totalorder %s26, 1
      %p185 = por %p183, %p184
      %p187 = scmp.ne.s32.totalorder %s170, %s186
      %p188 = scmp.eq.s32.totalorder %s26, 0
      %p189 = por %p187, %p188
      %p190 = scmp.le.s32.totalorder 1, %s20
      %p191 = scmp.lt.s32.totalorder %s20, 3
      %p192 = pnand %p190, %p191
      %p193 = pneg %p192
      // Predicated region
      $region9: #{tpu_custom_call.1} parent=5 // pred_check
        _
      $region10: #{tpu_custom_call.1} parent=5 // pred_check_branch
        %195 = sbr.rel (%p192) target = $region12
      $region11: #{tpu_custom_call.1} parent=5 // pred_region
        %s196 = ssub.s32 %s20, 1
        // Predicated region
        $region13: #{tpu_custom_call.1} parent=11 // pred_check
          %p197 = pneg %p67
        $region14: #{tpu_custom_call.1} parent=11 // pred_check_branch
          %199 = sbr.rel (%p197) target = $region16
        $region15: #{tpu_custom_call.1} parent=11 // pred_region
          _
        $region16: #{tpu_custom_call.1} parent=11 // pred_fallthru
          _
        // Predicated region
        $region17: #{tpu_custom_call.1} parent=11 // pred_check
          %p200 = pneg %p88
        $region18: #{tpu_custom_call.1} parent=11 // pred_check_branch
          %202 = sbr.rel (%p200) target = $region20
        $region19: #{tpu_custom_call.1} parent=11 // pred_region
          _
        $region20: #{tpu_custom_call.1} parent=11 // pred_fallthru
          _
        // Predicated region
        $region21: #{tpu_custom_call.1} parent=11 // pred_check
          %p203 = pneg %p109
        $region22: #{tpu_custom_call.1} parent=11 // pred_check_branch
          %205 = sbr.rel (%p203) target = $region24
        $region23: #{tpu_custom_call.1} parent=11 // pred_region
          _
        $region24: #{tpu_custom_call.1} parent=11 // pred_fallthru
          _
        // Predicated region
        $region25: #{tpu_custom_call.1} parent=11 // pred_check
          %p206 = pneg %p130
        $region26: #{tpu_custom_call.1} parent=11 // pred_check_branch
          %208 = sbr.rel (%p206) target = $region28
        $region27: #{tpu_custom_call.1} parent=11 // pred_region
          _
        $region28: #{tpu_custom_call.1} parent=11 // pred_fallthru
          _
      $region12: #{tpu_custom_call.1} parent=5 // pred_fallthru
        _
      %p209 = scmp.lt.s32.totalorder %s20, 2
      // Predicated region
      $region29: #{tpu_custom_call.1} parent=5 // pred_check
        %p210 = pneg %p209
      $region30: #{tpu_custom_call.1} parent=5 // pred_check_branch
        %212 = sbr.rel (%p210) target = $region32
      $region31: #{tpu_custom_call.1} parent=5 // pred_region
        // Predicated region
        $region33: #{tpu_custom_call.1} parent=31 // pred_check
          %p213 = pneg %p40
        $region34: #{tpu_custom_call.1} parent=31 // pred_check_branch
          %215 = sbr.rel (%p213) target = $region36
        $region35: #{tpu_custom_call.1} parent=31 // pred_region
          %s216 = smul.u32 8, %s20
          %p217 = scmp.lt.s32.totalorder %s216, 15
          %s218 = scalar_select %p217, %s216, 15
          %s219 = smul.addr %s218, 8
          %s220 = scalar_lea.vmem %s1, %s219
          %s221 = smul.u32 8, %s20
        $region36: #{tpu_custom_call.1} parent=31 // pred_fallthru
          _
      $region32: #{tpu_custom_call.1} parent=5 // pred_fallthru
        _
      %p222 = scmp.le.s32.totalorder 1, %s20
      %p223 = scmp.lt.s32.totalorder %s20, 3
      %p224 = pnand %p222, %p223
      %p225 = pneg %p224
      // Predicated region
      $region37: #{tpu_custom_call.1} parent=5 // pred_check
        _
      $region38: #{tpu_custom_call.1} parent=5 // pred_check_branch
        %227 = sbr.rel (%p224) target = $region40
      $region39: #{tpu_custom_call.1} parent=5 // pred_region
        %s228 = ssub.s32 %s20, 1
        %s229 = smul.u32 8, %s25
        %p230 = scmp.lt.s32.totalorder %s229, 15
        %s231 = scalar_select %p230, %s229, 15
        %s232 = smul.addr %s231, 8
        %s233 = scalar_lea.vmem %s1, %s232
        %p234 = pneg %p46
        %p235 = pneg %p43
        %p236 = pneg %p67
        %p237 = pneg %p64
        %p238 = pneg %p88
        %p239 = pneg %p85
        %p240 = pneg %p109
        %p241 = pneg %p106
        %p242 = pneg %p130
        %p243 = pneg %p127
        %p244 = pneg %p156
        %p245 = pneg %p153
        %s246 = smul.u32 8, %s25
        %p247 = scmp.lt.s32.totalorder %s246, 15
        %s248 = scalar_select %p247, %s246, 15
        %s249 = smul.addr %s248, 8
        %s250 = scalar_lea.vmem %s6, %s249
        %p251 = pneg %p182
        %p252 = pneg %p179
        %s253 = sand.u32 %s169, 1
        %s254 = scalar_lea.sflag [#allocation6], %s253
        %s255 = sand.u32 %s169, 1
        %s256 = scalar_lea.vmem [#allocation5], %s255
        %s257 = smul.u32 8, %s25
        %p258 = scmp.lt.s32.totalorder %s257, 15
        %s259 = scalar_select %p258, %s257, 15
        %s260 = smul.addr %s259, 8
        %s261 = scalar_lea.vmem %s1, %s260
        %s262 = smul.u32 8, %s25
        %s263 = smul.u32 8, %s25
        %p264 = scmp.lt.s32.totalorder %s263, 15
        %s265 = scalar_select %p264, %s263, 15
        %s266 = smul.addr %s265, 8
        %s267 = scalar_lea.vmem %s6, %s266
        %s268 = smul.u32 8, %s25
        %v269 = vld [vmem:[%s261] sm:$0xff]
        %v270 = vld [vmem:[%s261 + $0x8] sm:$0xff]
        %v271 = vld [vmem:[%s261 + $0x10] sm:$0xff]
        %v272 = vld [vmem:[%s261 + $0x18] sm:$0xff]
        %v273 = vld [vmem:[%s261 + $0x20] sm:$0xff]
        %v274 = vld [vmem:[%s261 + $0x28] sm:$0xff]
        %v275 = vld [vmem:[%s261 + $0x30] sm:$0xff]
        %v276 = vld [vmem:[%s261 + $0x38] sm:$0xff]
        %v277 = vld [vmem:[%s2] sm:$0xff]
        %v278 = vld [vmem:[%s2 + $0x8] sm:$0xff]
        %v279 = vld [vmem:[%s2 + $0x10] sm:$0xff]
        %v280 = vld [vmem:[%s2 + $0x18] sm:$0xff]
        %v281 = vld [vmem:[%s3] sm:$0x1]
        %v283 = vlaneseq
        %v284 = vshrl.u32 %v283, 7
        %v285 = vsub.s32 0, %v284
        %v286 = vrot.slane %v281, %v285
        %vm288 = vcmask 261120
        %v290 = vsel %vm288, %v269, 0
        %v293 = vsel %vm288, %v270, 0
        %v296 = vsel %vm288, %v271, 0
        %v299 = vsel %vm288, %v272, 0
        %v302 = vsel %vm288, %v273, 0
        %v305 = vsel %vm288, %v274, 0
        %v308 = vsel %vm288, %v275, 0
        %v311 = vsel %vm288, %v276, 0
        %v314 = vsel %vm288, %v277, 0
        %v317 = vsel %vm288, %v278, 0
        %v320 = vsel %vm288, %v279, 0
        %v323 = vsel %vm288, %v280, 0
        %325 = vmatprep.subr.mxu0 0.0
        %326 = vmatpush1.xpose.msra.mxu0 %v314
        %327 = vmatprep.subr.mxu0 0.0
        %328 = vmatpush1.xpose.msra.mxu0 %v317
        %329 = vmatprep.subr.mxu0 0.0
        %330 = vmatpush1.xpose.msra.mxu0 %v320
        %331 = vmatprep.subr.mxu0 0.0
        %332 = vmatpush1.xpose.msra.mxu0 %v323
        %333 = vmatprep.subr.mxu0 0.0
        %334 = vmatpush1.xpose.msra.mxu0 0.0
        %335 = vmatprep.subr.mxu0 0.0
        %336 = vmatpush1.xpose.msra.mxu0 0.0
        %337 = vmatprep.subr.mxu0 0.0
        %338 = vmatpush1.xpose.msra.mxu0 0.0
        %339 = vmatprep.subr.mxu0 0.0
        %340 = vmatpush1.xpose.msra.mxu0 0.0
        %341 = vmatprep.subr.mxu0 0.0
        %342 = vmatpush1.xpose.msra.mxu0 0.0
        %343 = vmatprep.subr.mxu0 0.0
        %344 = vmatpush1.xpose.msra.mxu0 0.0
        %345 = vmatprep.subr.mxu0 0.0
        %346 = vmatpush1.xpose.msra.mxu0 0.0
        %347 = vmatprep.subr.mxu0 0.0
        %348 = vmatpush1.xpose.msra.mxu0 0.0
        %349 = vmatprep.subr.mxu0 0.0
        %350 = vmatpush1.xpose.msra.mxu0 0.0
        %351 = vmatprep.subr.mxu0 0.0
        %352 = vmatpush1.xpose.msra.mxu0 0.0
        %353 = vmatprep.subr.mxu0 0.0
        %354 = vmatpush1.xpose.msra.mxu0 0.0
        %355 = vmatprep.subr.mxu0 0.0
        %356 = vmatpush1.xpose.msra.mxu0 0.0
        %357 = vmatprep.subr.mxu0 0.0
        %358 = vmatpush1.xpose.msra.mxu0 0.0
        %359 = vmatprep.subr.mxu0 0.0
        %360 = vmatpush1.xpose.msra.mxu0 0.0
        %361 = vmatprep.subr.mxu0 0.0
        %362 = vmatpush1.xpose.msra.mxu0 0.0
        %363 = vmatprep.subr.mxu0 0.0
        %364 = vmatpush1.xpose.msra.mxu0 0.0
        %365 = vmatprep.subr.mxu0 0.0
        %366 = vmatpush1.xpose.msra.mxu0 0.0
        %367 = vmatprep.subr.mxu0 0.0
        %368 = vmatpush1.xpose.msra.mxu0 0.0
        %369 = vmatprep.subr.mxu0 0.0
        %370 = vmatpush1.xpose.msra.mxu0 0.0
        %371 = vmatprep.subr.mxu0 0.0
        %372 = vmatpush1.xpose.msra.mxu0 0.0
        %373 = vmatprep.subr.mxu0 0.0
        %374 = vmatpush1.xpose.msra.mxu0 0.0
        %375 = vmatprep.subr.mxu0 0.0
        %376 = vmatpush1.xpose.msra.mxu0 0.0
        %377 = vmatprep.subr.mxu0 0.0
        %378 = vmatpush1.xpose.msra.mxu0 0.0
        %379 = vmatprep.subr.mxu0 0.0
        %380 = vmatpush1.xpose.msra.mxu0 0.0
        %381 = vmatprep.subr.mxu0 0.0
        %382 = vmatpush1.xpose.msra.mxu0 0.0
        %383 = vmatprep.subr.mxu0 0.0
        %384 = vmatpush1.xpose.msra.mxu0 0.0
        %385 = vmatprep.subr.mxu0 0.0
        %386 = vmatpush1.xpose.msra.mxu0 0.0
        %387 = vmatprep.subr.mxu0 0.0
        %388 = vmatpush1.xpose.msra.mxu0 0.0
        %389 = vmatprep.mubr.f32.mxu0 0.0
        %390 = vmatmul.mubr.f32.gmra.mrb[0].mxu0 %v290
        %v391 = vpop.f32.mrb[0].mxu0
        %v392 = vadd.f32 %v286, %v391
        %v393 = vpop.f32.mrb[0].mxu0
        %394 = vmatprep.mubr.f32.mxu0 0.0
        %395 = vmatmul.mubr.f32.gmra.mrb[0].mxu0 %v293
        %v396 = vpop.f32.mrb[0].mxu0
        %v397 = vadd.f32 %v286, %v396
        %v398 = vpop.f32.mrb[0].mxu0
        %399 = vmatprep.mubr.f32.mxu0 0.0
        %400 = vmatmul.mubr.f32.gmra.mrb[0].mxu0 %v296
        %v401 = vpop.f32.mrb[0].mxu0
        %v402 = vadd.f32 %v286, %v401
        %v403 = vpop.f32.mrb[0].mxu0
        %404 = vmatprep.mubr.f32.mxu0 0.0
        %405 = vmatmul.mubr.f32.gmra.mrb[0].mxu0 %v299
        %v406 = vpop.f32.mrb[0].mxu0
        %v407 = vadd.f32 %v286, %v406
        %v408 = vpop.f32.mrb[0].mxu0
        %409 = vmatprep.mubr.f32.mxu0 0.0
        %410 = vmatmul.mubr.f32.gmra.mrb[0].mxu0 %v302
        %v411 = vpop.f32.mrb[0].mxu0
        %v412 = vadd.f32 %v286, %v411
        %v413 = vpop.f32.mrb[0].mxu0
        %414 = vmatprep.mubr.f32.mxu0 0.0
        %415 = vmatmul.mubr.f32.gmra.mrb[0].mxu0 %v305
        %v416 = vpop.f32.mrb[0].mxu0
        %v417 = vadd.f32 %v286, %v416
        %v418 = vpop.f32.mrb[0].mxu0
        %419 = vmatprep.mubr.f32.mxu0 0.0
        %420 = vmatmul.mubr.f32.gmra.mrb[0].mxu0 %v308
        %v421 = vpop.f32.mrb[0].mxu0
        %v422 = vadd.f32 %v286, %v421
        %v423 = vpop.f32.mrb[0].mxu0
        %424 = vmatprep.mubr.f32.mxu0 0.0
        %425 = vmatmul.mubr.f32.gmra.mrb[0].mxu0 %v311
        %v426 = vpop.f32.mrb[0].mxu0
        %v427 = vadd.f32 %v286, %v426
        %v428 = vpop.f32.mrb[0].mxu0
        %429 = vdwg.mxu0
        %v430 = vmax.f32 %v392, 0.0
        %v431 = vmax.f32 %v397, 0.0
        %v432 = vmax.f32 %v402, 0.0
        %v433 = vmax.f32 %v407, 0.0
        %v434 = vmax.f32 %v412, 0.0
        %v435 = vmax.f32 %v417, 0.0
        %v436 = vmax.f32 %v422, 0.0
        %v437 = vmax.f32 %v427, 0.0
        %s438 = smul.u32 %s25, 64
        %v439 = vlaneseq
        %v440 = vshrl.u32 %v439, 7
        %v441 = vadd.s32 %v440, 8
        %v442 = vadd.s32 %v440, 16
        %v443 = vadd.s32 %v440, 24
        %v444 = vadd.s32 %v440, 32
        %v445 = vadd.s32 %v440, 40
        %v446 = vadd.s32 %v440, 48
        %v447 = vadd.s32 %v440, 56
        %v448 = vlaneseq
        %v449 = vand.u32 %v448, 127
        %v450 = vstv %s438
        %v451 = vadd.s32 %v440, %v450
        %v452 = vadd.s32 %v441, %v450
        %v453 = vadd.s32 %v442, %v450
        %v454 = vadd.s32 %v443, %v450
        %v455 = vadd.s32 %v444, %v450
        %v456 = vadd.s32 %v445, %v450
        %v457 = vadd.s32 %v446, %v450
        %v458 = vadd.s32 %v447, %v450
        %v459 = vmul.u32 %v451, 32
        %v460 = vmul.u32 %v452, 32
        %v461 = vmul.u32 %v453, 32
        %v462 = vmul.u32 %v454, 32
        %v463 = vmul.u32 %v455, 32
        %v464 = vmul.u32 %v456, 32
        %v465 = vmul.u32 %v457, 32
        %v466 = vmul.u32 %v458, 32
        %v467 = vadd.s32 %v459, %v449
        %v468 = vadd.s32 %v460, %v449
        %v469 = vadd.s32 %v461, %v449
        %v470 = vadd.s32 %v462, %v449
        %v471 = vadd.s32 %v463, %v449
        %v472 = vadd.s32 %v464, %v449
        %v473 = vadd.s32 %v465, %v449
        %v474 = vadd.s32 %v466, %v449
        %s475 = sld [smem:[#allocation3]]
        %v476 = vstv %s475
        %v477 = vxor.u32 %v467, %v476
        %v478 = vxor.u32 %v468, %v476
        %v479 = vxor.u32 %v469, %v476
        %v480 = vxor.u32 %v470, %v476
        %v481 = vxor.u32 %v471, %v476
        %v482 = vxor.u32 %v472, %v476
        %v483 = vxor.u32 %v473, %v476
        %v484 = vxor.u32 %v474, %v476
        %v485 = vmul.u32 %v477, 2246822507
        %v486 = vmul.u32 %v478, 2246822507
        %v487 = vmul.u32 %v479, 2246822507
        %v488 = vmul.u32 %v480, 2246822507
        %v489 = vmul.u32 %v481, 2246822507
        %v490 = vmul.u32 %v482, 2246822507
        %v491 = vmul.u32 %v483, 2246822507
        %v492 = vmul.u32 %v484, 2246822507
        %v493 = vshrl.u32 %v485, 13
        %v494 = vshrl.u32 %v486, 13
        %v495 = vshrl.u32 %v487, 13
        %v496 = vshrl.u32 %v488, 13
        %v497 = vshrl.u32 %v489, 13
        %v498 = vshrl.u32 %v490, 13
        %v499 = vshrl.u32 %v491, 13
        %v500 = vshrl.u32 %v492, 13
        %v501 = vxor.u32 %v485, %v493
        %v502 = vxor.u32 %v486, %v494
        %v503 = vxor.u32 %v487, %v495
        %v504 = vxor.u32 %v488, %v496
        %v505 = vxor.u32 %v489, %v497
        %v506 = vxor.u32 %v490, %v498
        %v507 = vxor.u32 %v491, %v499
        %v508 = vxor.u32 %v492, %v500
        %v509 = vmul.u32 %v501, 3266489909
        %v510 = vmul.u32 %v502, 3266489909
        %v511 = vmul.u32 %v503, 3266489909
        %v512 = vmul.u32 %v504, 3266489909
        %v513 = vmul.u32 %v505, 3266489909
        %v514 = vmul.u32 %v506, 3266489909
        %v515 = vmul.u32 %v507, 3266489909
        %v516 = vmul.u32 %v508, 3266489909
        %v517 = vshrl.u32 %v509, 16
        %v518 = vshrl.u32 %v510, 16
        %v519 = vshrl.u32 %v511, 16
        %v520 = vshrl.u32 %v512, 16
        %v521 = vshrl.u32 %v513, 16
        %v522 = vshrl.u32 %v514, 16
        %v523 = vshrl.u32 %v515, 16
        %v524 = vshrl.u32 %v516, 16
        %v525 = vxor.u32 %v509, %v517
        %v526 = vxor.u32 %v510, %v518
        %v527 = vxor.u32 %v511, %v519
        %v528 = vxor.u32 %v512, %v520
        %v529 = vxor.u32 %v513, %v521
        %v530 = vxor.u32 %v514, %v522
        %v531 = vxor.u32 %v515, %v523
        %v532 = vxor.u32 %v516, %v524
        %v533 = vand.u32 %v525, 16777215
        %v534 = vand.u32 %v526, 16777215
        %v535 = vand.u32 %v527, 16777215
        %v536 = vand.u32 %v528, 16777215
        %v537 = vand.u32 %v529, 16777215
        %v538 = vand.u32 %v530, 16777215
        %v539 = vand.u32 %v531, 16777215
        %v540 = vand.u32 %v532, 16777215
        %vm541 = vcmp.ge.u32.totalorder %v533, 11744051
        %vm542 = vcmp.ge.u32.totalorder %v534, 11744051
        %vm543 = vcmp.ge.u32.totalorder %v535, 11744051
        %vm544 = vcmp.ge.u32.totalorder %v536, 11744051
        %vm545 = vcmp.ge.u32.totalorder %v537, 11744051
        %vm546 = vcmp.ge.u32.totalorder %v538, 11744051
        %vm547 = vcmp.ge.u32.totalorder %v539, 11744051
        %vm548 = vcmp.ge.u32.totalorder %v540, 11744051
        %v549 = vmul.f32 %v430, 3.3333333
        %v550 = vmul.f32 %v431, 3.3333333
        %v551 = vmul.f32 %v432, 3.3333333
        %v552 = vmul.f32 %v433, 3.3333333
        %v553 = vmul.f32 %v434, 3.3333333
        %v554 = vmul.f32 %v435, 3.3333333
        %v555 = vmul.f32 %v436, 3.3333333
        %v556 = vmul.f32 %v437, 3.3333333
        %v557 = vsel %vm541, %v549, 0.0
        %v558 = vsel %vm542, %v550, 0.0
        %v559 = vsel %vm543, %v551, 0.0
        %v560 = vsel %vm544, %v552, 0.0
        %v561 = vsel %vm545, %v553, 0.0
        %v562 = vsel %vm546, %v554, 0.0
        %v563 = vsel %vm547, %v555, 0.0
        %v564 = vsel %vm548, %v556, 0.0
        %565 = vst.msk [vmem:[%s267] sm:$0xff] %vm288, %v557
        %566 = vst.msk [vmem:[%s267 + $0x8] sm:$0xff] %vm288, %v558
        %567 = vst.msk [vmem:[%s267 + $0x10] sm:$0xff] %vm288, %v559
        %568 = vst.msk [vmem:[%s267 + $0x18] sm:$0xff] %vm288, %v560
        %569 = vst.msk [vmem:[%s267 + $0x20] sm:$0xff] %vm288, %v561
        %570 = vst.msk [vmem:[%s267 + $0x28] sm:$0xff] %vm288, %v562
        %571 = vst.msk [vmem:[%s267 + $0x30] sm:$0xff] %vm288, %v563
        %572 = vst.msk [vmem:[%s267 + $0x38] sm:$0xff] %vm288, %v564
        %v573 = vld [vmem:[%s4] sm:$0x1]
        %v574 = vld [vmem:[#allocation4] sm:$0x1]
        %576 = vset.pattern.permute.xlu0 0
        %577 = vperm.xlu0 %576, %v574
        %v578 = vpop.permute.xlu0 %577
        %v580 = vlaneseq
        %v581 = vshrl.u32 %v580, 7
        %v582 = vsub.s32 0, %v581
        %v583 = vrot.slane %v578, %v582
        %v585 = vsel %vm288, %v573, 0
        %v588 = vsel %vm288, %v557, 0
        %v591 = vsel %vm288, %v558, 0
        %v594 = vsel %vm288, %v559, 0
        %v597 = vsel %vm288, %v560, 0
        %v600 = vsel %vm288, %v561, 0
        %v603 = vsel %vm288, %v562, 0
        %v606 = vsel %vm288, %v563, 0
        %v609 = vsel %vm288, %v564, 0
        %611 = vmatprep.subr.mxu0 0.0
        %612 = vmatpush1.xpose.msra.mxu0 %v588
        %613 = vmatprep.subr.mxu0 0.0
        %614 = vmatpush1.xpose.msra.mxu0 %v591
        %615 = vmatprep.subr.mxu0 0.0
        %616 = vmatpush1.xpose.msra.mxu0 %v594
        %617 = vmatprep.subr.mxu0 0.0
        %618 = vmatpush1.xpose.msra.mxu0 %v597
        %619 = vmatprep.subr.mxu0 0.0
        %620 = vmatpush1.xpose.msra.mxu0 %v600
        %621 = vmatprep.subr.mxu0 0.0
        %622 = vmatpush1.xpose.msra.mxu0 %v603
        %623 = vmatprep.subr.mxu0 0.0
        %624 = vmatpush1.xpose.msra.mxu0 %v606
        %625 = vmatprep.subr.mxu0 0.0
        %626 = vmatpush1.xpose.msra.mxu0 %v609
        %627 = vmatprep.subr.mxu0 0.0
        %628 = vmatpush1.xpose.msra.mxu0 0.0
        %629 = vmatprep.subr.mxu0 0.0
        %630 = vmatpush1.xpose.msra.mxu0 0.0
        %631 = vmatprep.subr.mxu0 0.0
        %632 = vmatpush1.xpose.msra.mxu0 0.0
        %633 = vmatprep.subr.mxu0 0.0
        %634 = vmatpush1.xpose.msra.mxu0 0.0
        %635 = vmatprep.subr.mxu0 0.0
        %636 = vmatpush1.xpose.msra.mxu0 0.0
        %637 = vmatprep.subr.mxu0 0.0
        %638 = vmatpush1.xpose.msra.mxu0 0.0
        %639 = vmatprep.subr.mxu0 0.0
        %640 = vmatpush1.xpose.msra.mxu0 0.0
        %641 = vmatprep.subr.mxu0 0.0
        %642 = vmatpush1.xpose.msra.mxu0 0.0
        %643 = vmatprep.subr.mxu0 0.0
        %644 = vmatpush1.xpose.msra.mxu0 0.0
        %645 = vmatprep.subr.mxu0 0.0
        %646 = vmatpush1.xpose.msra.mxu0 0.0
        %647 = vmatprep.subr.mxu0 0.0
        %648 = vmatpush1.xpose.msra.mxu0 0.0
        %649 = vmatprep.subr.mxu0 0.0
        %650 = vmatpush1.xpose.msra.mxu0 0.0
        %651 = vmatprep.subr.mxu0 0.0
        %652 = vmatpush1.xpose.msra.mxu0 0.0
        %653 = vmatprep.subr.mxu0 0.0
        %654 = vmatpush1.xpose.msra.mxu0 0.0
        %655 = vmatprep.subr.mxu0 0.0
        %656 = vmatpush1.xpose.msra.mxu0 0.0
        %657 = vmatprep.subr.mxu0 0.0
        %658 = vmatpush1.xpose.msra.mxu0 0.0
        %659 = vmatprep.subr.mxu0 0.0
        %660 = vmatpush1.xpose.msra.mxu0 0.0
        %661 = vmatprep.subr.mxu0 0.0
        %662 = vmatpush1.xpose.msra.mxu0 0.0
        %663 = vmatprep.subr.mxu0 0.0
        %664 = vmatpush1.xpose.msra.mxu0 0.0
        %665 = vmatprep.subr.mxu0 0.0
        %666 = vmatpush1.xpose.msra.mxu0 0.0
        %667 = vmatprep.subr.mxu0 0.0
        %668 = vmatpush1.xpose.msra.mxu0 0.0
        %669 = vmatprep.subr.mxu0 0.0
        %670 = vmatpush1.xpose.msra.mxu0 0.0
        %671 = vmatprep.subr.mxu0 0.0
        %672 = vmatpush1.xpose.msra.mxu0 0.0
        %673 = vmatprep.subr.mxu0 0.0
        %674 = vmatpush1.xpose.msra.mxu0 0.0
        %675 = vmatprep.mubr.f32.mxu0 0.0
        %676 = vmatmul.mubr.f32.gmra.mrb[0].mxu0 %v585
        %v677 = vpop.f32.mrb[0].mxu0
        %v678 = vadd.f32 %v583, %v677
        %v679 = vpop.f32.mrb[0].mxu0
        %680 = vdwg.mxu0
        %v681 = vxor.u32 %v678, 2147483648
        %v682 = vmul.f32 %v681, 1.442695
        %v683 = vpow.pop %v682
        %v684 = vadd.f32 %v683, 1.0
        %v685 = vrcp.pop %v684
        %v686 = vmul.f32 1.0, %v685
        %vm687 = vcmask 516096
        %688 = vst.msk [vmem:[%s256] sm:$0x1] %vm687, %v686
        %s689 = smul.u32 8, %s25
        %p690 = scmp.lt.s32.totalorder %s689, 15
        %s691 = scalar_select %p690, %s689, 15
        %s692 = smul.addr %s691, 8
        %s693 = scalar_lea.vmem %s6, %s692
        %s694 = sand.u32 %s169, 1
        %s695 = scalar_lea.sflag [#allocation6], %s694
        %s696 = sand.u32 %s169, 1
        %s697 = scalar_lea.vmem [#allocation5], %s696
        // Predicated region
        $region41: #{tpu_custom_call.1} parent=39 // pred_check
          %p698 = pneg %p153
        $region42: #{tpu_custom_call.1} parent=39 // pred_check_branch
          %700 = sbr.rel (%p698) target = $region44
        $region43: #{tpu_custom_call.1} parent=39 // pred_region
          %s701 = smul.u32 8, %s25
        $region44: #{tpu_custom_call.1} parent=39 // pred_fallthru
          _
        // Predicated region
        $region45: #{tpu_custom_call.1} parent=39 // pred_check
          %p702 = pneg %p179
        $region46: #{tpu_custom_call.1} parent=39 // pred_check_branch
          %704 = sbr.rel (%p702) target = $region48
        $region47: #{tpu_custom_call.1} parent=39 // pred_region
          %s706 = ssub.s32 16, 16
          %707 = vsyncadd %s695, %s706
          %s708 = smul.addr %s25, 16
          %s709 = scalar_lea.hbm %s7, %s708
          %s711 = sshll.u32 %s697, 4
          %s712 = int_to_ptr.vmem [resolvable:$true] %s711
          %714 = dma.vmem_to_hbm [thread:$0]  %s712, 16, %s709, %s695
        $region48: #{tpu_custom_call.1} parent=39 // pred_fallthru
          _
      $region40: #{tpu_custom_call.1} parent=5 // pred_fallthru
        _
      %p715 = scmp.le.s32.totalorder 2, %s20
      // Predicated region
      $region49: #{tpu_custom_call.1} parent=5 // pred_check
        %p716 = pneg %p715
      $region50: #{tpu_custom_call.1} parent=5 // pred_check_branch
        %718 = sbr.rel (%p716) target = $region52
      $region51: #{tpu_custom_call.1} parent=5 // pred_region
        %s719 = ssub.s32 %s20, 2
        // Predicated region
        $region53: #{tpu_custom_call.1} parent=51 // pred_check
          %p720 = pneg %p159
        $region54: #{tpu_custom_call.1} parent=51 // pred_check_branch
          %722 = sbr.rel (%p720) target = $region56
        $region55: #{tpu_custom_call.1} parent=51 // pred_region
          %s723 = smul.u32 8, %s26
          %p724 = scmp.lt.s32.totalorder %s723, 15
          %s725 = scalar_select %p724, %s723, 15
          %s726 = smul.addr %s725, 8
          %s727 = scalar_lea.vmem %s6, %s726
        $region56: #{tpu_custom_call.1} parent=51 // pred_fallthru
          _
        // Predicated region
        $region57: #{tpu_custom_call.1} parent=51 // pred_check
          %p728 = pneg %p185
        $region58: #{tpu_custom_call.1} parent=51 // pred_check_branch
          %730 = sbr.rel (%p728) target = $region60
        $region59: #{tpu_custom_call.1} parent=51 // pred_region
          %s731 = sand.u32 %s170, 1
          %s732 = scalar_lea.sflag [#allocation6], %s731
          %s733 = sand.u32 %s170, 1
          %s734 = scalar_lea.vmem [#allocation5], %s733
          %735 = dma.done %s732, 16
        $region60: #{tpu_custom_call.1} parent=51 // pred_fallthru
          _
      $region52: #{tpu_custom_call.1} parent=5 // pred_fallthru
        _
    $region6: #{tpu_custom_call.1} parent=1 // loop_footer
      %s24 = sadd.s32 1, %s20
    $region7: #{tpu_custom_call.1} parent=1 // loop_footer_branch
      %19 = sbr.rel target = $region3
    $region8: #{tpu_custom_call.1} parent=1 // loop_exit
      _
    %736 = vsyncpa [#allocation6], 1
    %s737 = scalar_lea.sflag [#allocation6], 1
    %738 = vsyncpa %s737, 1

</llo_original>
